<compile_context>
chip_gen: v5e
topology: v5e:2x2
jax: 0.10.0
libtpu: 0.0.40
codegen_flags: <defaults>
</compile_context>

<pallas_src>
import jax
import jax.numpy as jnp
from jax.experimental import pallas as pl
from jax.experimental.pallas import tpu as pltpu

ALPHA = 0.1          # label smoothing coefficient (module default)
IGNORE_INDEX = -1.0  # module default ignore_index


def _make_kernel(n_total, tile_n, alpha, ignore_index, has_weight):
    def body(x_ref, lbl_ref, w_ref, out_ref):
        k = x_ref.shape[0]
        i = pl.program_id(0)

        # Validity mask for the (possibly out-of-bounds) last tile.  Pallas
        # gives unspecified values for OOB lanes, so mask *before* any
        # arithmetic (0 * inf = nan would otherwise poison the partial sum).
        col = jax.lax.broadcasted_iota(jnp.int32, (1, tile_n), 1)
        valid = col < (n_total - i * tile_n)                      # (1, tile_n)

        x = jnp.where(valid, x_ref[...].astype(jnp.float32), 0.0)
        lbl = jnp.where(valid, lbl_ref[...].astype(jnp.float32), ignore_index)

        # mask from the *unsmoothed* label (same ordering as the module);
        # invalid lanes were forced to ignore_index -> mask = 0 -> coeff = 0.
        mask = 1.0 - (lbl == ignore_index).astype(jnp.float32)
        coeff = (lbl * (1.0 - alpha) + alpha / k) * mask          # (K, tile_n)
        if has_weight:
            coeff = coeff * w_ref[...].astype(jnp.float32)        # (K,1) bcast

        # Numerically stable log_softmax pieces over the class (sublane) axis.
        m = jnp.max(x, axis=0, keepdims=True)
        z = x - m
        lse = jnp.log(jnp.sum(jnp.exp(z), axis=0, keepdims=True))  # (1,tile_n)

        # loss = -sum_k coeff*(z - lse) = lse*sum_k(coeff) - sum_k(coeff*z)
        s_c = jnp.sum(coeff, axis=0, keepdims=True)
        s_cz = jnp.sum(coeff * z, axis=0, keepdims=True)
        loss_lane = lse * s_c - s_cz                    # exactly 0 in OOB lanes

        # One partial sum per grid step, written into lane 0 of a dense
        # (1, 128) output block (keeps the grid axis "parallel").
        partial = jnp.sum(loss_lane)
        lane = jax.lax.broadcasted_iota(jnp.int32, (1, 128), 1)
        out_ref[...] = jnp.where(lane == 0, partial, 0.0).astype(jnp.float32)

    if has_weight:
        def kernel(x_ref, lbl_ref, w_ref, out_ref):
            body(x_ref, lbl_ref, w_ref, out_ref)
    else:
        def kernel(x_ref, lbl_ref, out_ref):
            body(x_ref, lbl_ref, None, out_ref)
    return kernel


def _round_up(x, m):
    return (x + m - 1) // m * m


def nll_loss_cnn(outputs, label, weight=None, alpha=ALPHA,
                 ignore_index=IGNORE_INDEX):
    """JAX/Pallas equivalent of NLLLossCNN.forward."""
    # Replicate the (1, *label.shape) unsqueeze fix-up from the module.
    if outputs.shape != label.shape:
        if (1,) + tuple(label.shape) == tuple(outputs.shape):
            label = label[None]
    assert outputs.shape == label.shape, \
        f"Outputs shape must match labels! {outputs.shape}, {label.shape}"
    assert outputs.ndim == 2, "this kernel supports (N, K) inputs"

    N, K = outputs.shape
    has_weight = weight is not None

    # ---- tile-size selection -------------------------------------------------
    # Target ~4 MiB of input bytes per grid step, bounded by a conservative
    # VMEM model: double-buffered inputs plus ~6 f32 (K, tile_n) temporaries
    # must stay well under v7x's 32 MiB scoped-VMEM default.
    bytes_per_col = K * (outputs.dtype.itemsize + label.dtype.itemsize)
    target_input_bytes = 4 * 1024 * 1024
    tile_n = max(128, (target_input_bytes // bytes_per_col) // 128 * 128)

    vmem_bytes_per_col = 2 * bytes_per_col + 6 * K * 4
    vmem_budget = 24 * 1024 * 1024
    tile_n = min(tile_n, max(128, (vmem_budget // vmem_bytes_per_col) // 128 * 128))
    tile_n = min(tile_n, 65536)
    # >= 2 grid steps when N allows: the "parallel" axis then shards across
    # v7x's two TensorCores (and keeps the two steps balanced).
    tile_n = min(tile_n, _round_up(pl.cdiv(N, 2), 128))
    grid_n = pl.cdiv(N, tile_n)

    # ---- lane-dense layout: class axis -> sublanes, batch -> lanes -----------
    # No padding: the last tile may run past N and is masked in-kernel.
    # Original dtypes preserved (kernel upcasts, bf16 inputs move half bytes).
    xt = outputs.T
    lt = label.T

    in_specs = [
        pl.BlockSpec((K, tile_n), lambda i: (0, i)),
        pl.BlockSpec((K, tile_n), lambda i: (0, i)),
    ]
    args = [xt, lt]
    if has_weight:
        w = jnp.broadcast_to(
            jnp.asarray(weight, jnp.float32).reshape(-1), (K,)).reshape(K, 1)
        in_specs.append(pl.BlockSpec((K, 1), lambda i: (0, 0)))  # grid-invariant
        args.append(w)

    kernel = _make_kernel(N, tile_n, float(alpha), float(ignore_index),
                          has_weight)

    partials = pl.pallas_call(
        kernel,
        out_shape=jax.ShapeDtypeStruct((1, grid_n * 128), jnp.float32),
        grid=(grid_n,),
        in_specs=in_specs,
        out_specs=pl.BlockSpec((1, 128), lambda i: (0, i)),
        compiler_params=pltpu.CompilerParams(
            dimension_semantics=("parallel",),
            vmem_limit_bytes=32 * 1024 * 1024,
        ),
    )(*args)

    # Only lane 0 of each (1, 128) block is non-zero; the rest are zeros.
    return jnp.sum(partials) / jnp.float32(N)


def _reference(outputs, label, weight=None):
    # Pure-JAX reference for a sanity check.
    N, K = outputs.shape
    if weight is None:
        weight = jnp.ones((K,), dtype=jnp.float32)
    weight = jnp.broadcast_to(jnp.asarray(weight, jnp.float32).reshape(-1), (K,))
    label = label.astype(jnp.float32)
    mask = 1.0 - (label == IGNORE_INDEX).astype(jnp.float32)
    label = label * (1.0 - ALPHA) + ALPHA / K
    logp = jax.nn.log_softmax(outputs.astype(jnp.float32), axis=1)
    loss = -(label * mask * logp * weight.reshape(1, K)).sum(axis=1)
    return loss.mean()


if __name__ == "__main__":
    key = jax.random.PRNGKey(0)
    keys = jax.random.split(key, 6)

    # ---- case 1: small f32 problem (batch=16, classes=8) ---------------------
    N, K = 16, 8
    outputs = jax.random.normal(keys[0], (N, K), dtype=jnp.float32)
    label = (jax.random.uniform(keys[1], (N, K)) > 0.5).astype(jnp.float32)
    ignore_rows = jax.random.bernoulli(keys[2], 0.2, (N, 1))
    label = jnp.where(ignore_rows, jnp.full((N, K), IGNORE_INDEX, jnp.float32), label)

    loss = jax.block_until_ready(nll_loss_cnn(outputs, label))

    # module's invalid-loss guard (done host-side, like the PyTorch raise)
    lv = float(loss)
    if lv < 0 or lv != lv or bool(jnp.isinf(loss)):
        raise ValueError(f"invalid loss! loss: {lv}")

    ref = float(_reference(outputs, label))
    assert abs(lv - ref) < 1e-4, (lv, ref)

    # ---- case 2: ragged bf16 batch (exercises the masked partial tile) -------
    N2, K2 = 200, 6
    outputs2 = jax.random.normal(keys[3], (N2, K2), dtype=jnp.float32).astype(jnp.bfloat16)
    label2 = (jax.random.uniform(keys[4], (N2, K2)) > 0.5).astype(jnp.bfloat16)
    ignore_rows2 = jax.random.bernoulli(keys[5], 0.15, (N2, 1))
    label2 = jnp.where(ignore_rows2,
                       jnp.full((N2, K2), IGNORE_INDEX, jnp.bfloat16), label2)

    loss2 = jax.block_until_ready(nll_loss_cnn(outputs2, label2))
    ref2 = float(_reference(outputs2, label2))
    assert abs(float(loss2) - ref2) < 1e-3, (float(loss2), ref2)

    # ---- case 3: explicit per-class weights (exercises the weighted path) ----
    w = jnp.asarray([0.5, 1.0, 2.0, 1.0, 0.25, 1.5], jnp.float32)
    loss3 = jax.block_until_ready(nll_loss_cnn(outputs2, label2, weight=w))
    ref3 = float(_reference(outputs2, label2, weight=w))
    assert abs(float(loss3) - ref3) < 1e-3, (float(loss3), ref3)

    print("KERNEL_OK")
</pallas_src>

<mosaic_0001>
module attributes {stable_mosaic.version = 11 : i64} {
  func.func @kernel(%arg0: i32, %arg1: memref<8x128xf32, #tpu.memory_space<vmem>>, %arg2: memref<8x128xf32, #tpu.memory_space<vmem>>, %arg3: memref<1x128xf32, #tpu.memory_space<vmem>>) attributes {dimension_semantics = [#tpu.dimension_semantics<parallel>], iteration_bounds = array<i64: 1>, scalar_prefetch = 0 : i64, scratch_operands = 0 : i64, tpu.core_type = #tpu.core_type<tc>, window_params = [{transform_indices = @transform_0, window_bounds = array<i64: 8, 128>}, {transform_indices = @transform_1, window_bounds = array<i64: 8, 128>}, {transform_indices = @transform_2, window_bounds = array<i64: 1, 128>}]} {
    %0 = tpu.iota {dimensions = array<i32: 1>} : vector<1x128xi32>
    %c128_i32 = arith.constant 128 : i32
    %1 = arith.muli %arg0, %c128_i32 : i32
    %c16_i32 = arith.constant 16 : i32
    %2 = arith.subi %c16_i32, %1 : i32
    %3 = vector.broadcast %2 : i32 to vector<1x128xi32>
    %4 = arith.cmpi slt, %0, %3 : vector<1x128xi32>
    %c0 = arith.constant 0 : index
    %c0_0 = arith.constant 0 : index
    %5 = vector.load %arg1[%c0, %c0_0] : memref<8x128xf32, #tpu.memory_space<vmem>>, vector<8x128xf32>
    %cst = arith.constant 0.000000e+00 : f32
    %6 = vector.shape_cast %4 : vector<1x128xi1> to vector<1x128xi1>
    %7 = vector.broadcast %6 : vector<1x128xi1> to vector<8x128xi1>
    %8 = vector.broadcast %cst : f32 to vector<8x128xf32>
    %9 = arith.select %7, %5, %8 : vector<8x128xi1>, vector<8x128xf32>
    %c0_1 = arith.constant 0 : index
    %c0_2 = arith.constant 0 : index
    %10 = vector.load %arg2[%c0_1, %c0_2] : memref<8x128xf32, #tpu.memory_space<vmem>>, vector<8x128xf32>
    %cst_3 = arith.constant -1.000000e+00 : f32
    %11 = vector.shape_cast %4 : vector<1x128xi1> to vector<1x128xi1>
    %12 = vector.broadcast %11 : vector<1x128xi1> to vector<8x128xi1>
    %13 = vector.broadcast %cst_3 : f32 to vector<8x128xf32>
    %14 = arith.select %12, %10, %13 : vector<8x128xi1>, vector<8x128xf32>
    %cst_4 = arith.constant -1.000000e+00 : f32
    %15 = vector.broadcast %cst_4 : f32 to vector<8x128xf32>
    %16 = arith.cmpf oeq, %14, %15 : vector<8x128xf32>
    %17 = arith.extui %16 : vector<8x128xi1> to vector<8x128xi32>
    %18 = arith.sitofp %17 : vector<8x128xi32> to vector<8x128xf32>
    %cst_5 = arith.constant 1.000000e+00 : f32
    %19 = vector.broadcast %cst_5 : f32 to vector<8x128xf32>
    %20 = arith.subf %19, %18 : vector<8x128xf32>
    %cst_6 = arith.constant 0.899999976 : f32
    %21 = vector.broadcast %cst_6 : f32 to vector<8x128xf32>
    %22 = arith.mulf %14, %21 : vector<8x128xf32>
    %cst_7 = arith.constant 1.250000e-02 : f32
    %23 = vector.broadcast %cst_7 : f32 to vector<8x128xf32>
    %24 = arith.addf %22, %23 : vector<8x128xf32>
    %25 = arith.mulf %24, %20 : vector<8x128xf32>
    %cst_8 = arith.constant dense<0xFF800000> : vector<128xf32>
    %26 = vector.multi_reduction <maximumf>, %9, %cst_8 [0] : vector<8x128xf32> to vector<128xf32>
    %27 = vector.shape_cast %26 : vector<128xf32> to vector<1x128xf32>
    %28 = vector.broadcast %27 : vector<1x128xf32> to vector<8x128xf32>
    %29 = arith.subf %9, %28 : vector<8x128xf32>
    %30 = math.exp %29 : vector<8x128xf32>
    %cst_9 = arith.constant dense<0.000000e+00> : vector<128xf32>
    %31 = vector.multi_reduction <add>, %30, %cst_9 [0] : vector<8x128xf32> to vector<128xf32>
    %32 = vector.shape_cast %31 : vector<128xf32> to vector<1x128xf32>
    %33 = math.log %32 : vector<1x128xf32>
    %cst_10 = arith.constant dense<0.000000e+00> : vector<128xf32>
    %34 = vector.multi_reduction <add>, %25, %cst_10 [0] : vector<8x128xf32> to vector<128xf32>
    %35 = vector.shape_cast %34 : vector<128xf32> to vector<1x128xf32>
    %36 = arith.mulf %25, %29 : vector<8x128xf32>
    %cst_11 = arith.constant dense<0.000000e+00> : vector<128xf32>
    %37 = vector.multi_reduction <add>, %36, %cst_11 [0] : vector<8x128xf32> to vector<128xf32>
    %38 = vector.shape_cast %37 : vector<128xf32> to vector<1x128xf32>
    %39 = arith.mulf %33, %35 : vector<1x128xf32>
    %40 = arith.subf %39, %38 : vector<1x128xf32>
    %41 = vector.shape_cast %40 : vector<1x128xf32> to vector<1x1x128xf32>
    %cst_12 = arith.constant dense<0.000000e+00> : vector<1xf32>
    %42 = vector.multi_reduction <add>, %41, %cst_12 [1, 2] : vector<1x1x128xf32> to vector<1xf32>
    %43 = vector.shape_cast %42 : vector<1xf32> to vector<1x1x1xf32>
    %44 = vector.extract %43[0, 0, 0] : f32 from vector<1x1x1xf32>
    %45 = tpu.iota {dimensions = array<i32: 1>} : vector<1x128xi32>
    %c0_i32 = arith.constant 0 : i32
    %46 = vector.broadcast %c0_i32 : i32 to vector<1x128xi32>
    %47 = arith.cmpi eq, %45, %46 : vector<1x128xi32>
    %cst_13 = arith.constant 0.000000e+00 : f32
    %48 = vector.broadcast %44 : f32 to vector<1x128xf32>
    %49 = vector.broadcast %cst_13 : f32 to vector<1x128xf32>
    %50 = arith.select %47, %48, %49 : vector<1x128xi1>, vector<1x128xf32>
    %c0_14 = arith.constant 0 : index
    %c0_15 = arith.constant 0 : index
    %51 = vector.load %arg3[%c0_14, %c0_15] : memref<1x128xf32, #tpu.memory_space<vmem>>, vector<1x128xf32>
    tpu.vector_store %arg3[%c0_14, %c0_15], %50 {strides = array<i32>} : memref<1x128xf32, #tpu.memory_space<vmem>>, vector<1x128xf32>,
    return
  }
  func.func @transform_0(%arg0: i32) -> (i32, i32) {
    %c0_i32 = arith.constant 0 : i32
    %c0_i32_0 = arith.constant 0 : i32
    return %c0_i32, %arg0 : i32, i32
  }
  func.func @transform_1(%arg0: i32) -> (i32, i32) {
    %c0_i32 = arith.constant 0 : i32
    %c0_i32_0 = arith.constant 0 : i32
    return %c0_i32, %arg0 : i32, i32
  }
  func.func @transform_2(%arg0: i32) -> (i32, i32) {
    %c0_i32 = arith.constant 0 : i32
    %c0_i32_0 = arith.constant 0 : i32
    return %c0_i32, %arg0 : i32, i32
  }
}

</mosaic_0001>

<llo_original>
// kernel: tpu_custom_call.1
$region0: #{tpu_custom_call.1}
  #allocation0 [shape = 'u32[]', space=smem, size = 0x4, offset = 0x4, fixed_abs, tag = 'smem constant byte address 0x4 - core index']
  #allocation1 [shape = 'u32[72,128]{1,0:T(1,128)}', space=vmem, size = 0x9000, scoped, tag = 'internal scratch']
  %s0 = inlined_call_operand.hbm [shape: f32[8,16], index: 0, kind: input, shape index: {}]
  %s1 = inlined_call_operand.hbm [shape: f32[8,16], index: 1, kind: input, shape index: {}]
  %s2 = inlined_call_operand.hbm [shape: f32[1,128], index: 2, kind: output, shape index: {}]
  %s3 = sld [smem:[#allocation0]]
  $region26: #{tpu_custom_call.1} parent=0
    _
  %s5 = ssub.s32 1, %s3
  %s6 = scalar_select 0, %s5, %s3
  $region1: #{tpu_custom_call.1} parent=0
    #allocation2 [shape = 'u8[4096]{0}', space=vmem, size = 0x1000, scoped, tag = 'input window, operand 0, single buffered']
    #allocation3 [shape = 's32[1]{0}', space=sflag, size = 0x4, scoped, tag = 'scoped memory for tpu_custom_call.1']
    #allocation4 [shape = 's32[1]{0}', space=sflag, size = 0x4, scoped, tag = 'scoped memory for tpu_custom_call.1']
    #allocation5 [shape = 'u8[4096]{0}', space=vmem, size = 0x1000, scoped, tag = 'input window, operand 1, single buffered']
    #allocation6 [shape = 's32[1]{0}', space=sflag, size = 0x4, scoped, tag = 'scoped memory for tpu_custom_call.1']
    #allocation7 [shape = 'u8[512]{0}', space=vmem, size = 0x400, scoped, tag = 'output window, operand 0, single buffered']
    %7 = vsyncpa [#allocation3], 0
    %8 = vsyncpa [#allocation6], 0
    %9 = vsyncpa [#allocation4], 0
    // Predicated region
    $region2: #{tpu_custom_call.1} parent=1 // pred_check
      _
    $region3: #{tpu_custom_call.1} parent=1 // pred_check_branch
      %11 = sbr.rel (0) target = $region5
    $region4: #{tpu_custom_call.1} parent=1 // pred_region
      %13 = vsyncadd [#allocation3], 0
      %s15 = sshll.u32 %s0, 4
      %s16 = int_to_ptr.hbm [resolvable:$true] %s15
      %s17 = sshll.u32 [#allocation2], 4
      %s18 = int_to_ptr.vmem [resolvable:$true] %s17
      %20 = dma.hbm_to_vmem [thread:$0]  %s16, 128, %s18, [#allocation3]
    $region5: #{tpu_custom_call.1} parent=1 // pred_fallthru
      _
    // Predicated region
    $region6: #{tpu_custom_call.1} parent=1 // pred_check
      _
    $region7: #{tpu_custom_call.1} parent=1 // pred_check_branch
      %22 = sbr.rel (0) target = $region9
    $region8: #{tpu_custom_call.1} parent=1 // pred_region
      %24 = vsyncadd [#allocation6], 0
      %s26 = sshll.u32 %s1, 4
      %s27 = int_to_ptr.hbm [resolvable:$true] %s26
      %s28 = sshll.u32 [#allocation5], 4
      %s29 = int_to_ptr.vmem [resolvable:$true] %s28
      %31 = dma.hbm_to_vmem [thread:$0]  %s27, 128, %s29, [#allocation6]
    $region9: #{tpu_custom_call.1} parent=1 // pred_fallthru
      _
    // Predicated region
    $region10: #{tpu_custom_call.1} parent=1 // pred_check
      _
    $region11: #{tpu_custom_call.1} parent=1 // pred_check_branch
      %33 = sbr.rel (0) target = $region13
    $region12: #{tpu_custom_call.1} parent=1 // pred_region
      %35 = dma.done [#allocation3], 128
    $region13: #{tpu_custom_call.1} parent=1 // pred_fallthru
      _
    // Predicated region
    $region14: #{tpu_custom_call.1} parent=1 // pred_check
      _
    $region15: #{tpu_custom_call.1} parent=1 // pred_check_branch
      %37 = sbr.rel (0) target = $region17
    $region16: #{tpu_custom_call.1} parent=1 // pred_region
      %39 = dma.done [#allocation6], 128
    $region17: #{tpu_custom_call.1} parent=1 // pred_fallthru
      _
    %v40 = vlaneseq
    %v41 = vand.u32 %v40, 127
    %s42 = smul.u32 0, 128
    %s43 = ssub.s32 16, %s42
    %v44 = vstv %s43
    %vm45 = vcmp.lt.s32.totalorder %v41, %v44
    %v46 = vld [vmem:[#allocation2] sm:$0xff]
    %v47 = vsel %vm45, 1, 0
    %vm48 = vcmp.eq.s32.totalorder %v47, 1
    %v49 = vsel %vm48, %v46, 0.0
    %v50 = vld [vmem:[#allocation5] sm:$0xff]
    %v51 = vsel %vm48, %v50, -1.0
    %vm52 = vcmp.eq.f32.partialorder %v51, -1.0
    %v53 = vsel %vm52, 1, 0
    %v54 = vcvt.s32.f32 %v53
    %v55 = vsub.f32 1.0, %v54
    %v56 = vmul.f32 %v51, 0.9
    %v57 = vadd.f32 %v56, 0.0125
    %v58 = vmul.f32 %v57, %v55
    %v59 = vrot.slane %v49, 4
    %v60 = vmax.f32 %v49, %v59
    %v61 = vrot.slane %v60, 2
    %v62 = vmax.f32 %v60, %v61
    %v63 = vrot.slane %v62, 1
    %v64 = vmax.f32 %v62, %v63
    %v65 = vsub.f32 %v49, %v64
    %v66 = vmul.f32 %v65, 1.442695
    %v67 = vpow.pop %v66
    %v68 = vrot.slane %v67, 4
    %v69 = vadd.f32 %v67, %v68
    %v70 = vrot.slane %v69, 2
    %v71 = vadd.f32 %v69, %v70
    %v72 = vrot.slane %v71, 1
    %v73 = vadd.f32 %v71, %v72
    %v74 = vlog2.pop %v73
    %v75 = vmul.f32 %v74, 0.6931472
    %v76 = vrot.slane %v58, 4
    %v77 = vadd.f32 %v58, %v76
    %v78 = vrot.slane %v77, 2
    %v79 = vadd.f32 %v77, %v78
    %v80 = vrot.slane %v79, 1
    %v81 = vadd.f32 %v79, %v80
    %v82 = vmul.f32 %v58, %v65
    %v83 = vrot.slane %v82, 4
    %v84 = vadd.f32 %v82, %v83
    %v85 = vrot.slane %v84, 2
    %v86 = vadd.f32 %v84, %v85
    %v87 = vrot.slane %v86, 1
    %v88 = vadd.f32 %v86, %v87
    %v89 = vmul.f32 %v75, %v81
    %v90 = vsub.f32 %v89, %v88
    %vm91 = vcmask 1040384
    %v92 = vsel %vm91, %v90, 0.0
    %93 = vadd.xlane.f32.xlu0 %v92
    %v94 = vpop.xlane.xlu0 %93
    %v95 = vrot.slane %v94, 4
    %v96 = vadd.f32 %v94, %v95
    %v97 = vrot.slane %v96, 2
    %v98 = vadd.f32 %v96, %v97
    %v99 = vrot.slane %v98, 1
    %v100 = vadd.f32 %v98, %v99
    %s101 = vtos %v100
    %vm102 = vcmp.eq.s32.totalorder %v41, 0
    %v103 = vstv %s101
    %v104 = vsel %vm102, %v103, 0.0
    %105 = vst [vmem:[#allocation7] sm:$0x1] %v104
    // Predicated region
    $region18: #{tpu_custom_call.1} parent=1 // pred_check
      _
    $region19: #{tpu_custom_call.1} parent=1 // pred_check_branch
      %107 = sbr.rel (0) target = $region21
    $region20: #{tpu_custom_call.1} parent=1 // pred_region
      %109 = vsyncadd [#allocation4], 0
      %s111 = sshll.u32 [#allocation7], 4
      %s112 = int_to_ptr.vmem [resolvable:$true] %s111
      %s113 = sshll.u32 %s2, 4
      %s114 = int_to_ptr.hbm [resolvable:$true] %s113
      %116 = dma.vmem_to_hbm [thread:$0]  %s112, 16, %s114, [#allocation4]
    $region21: #{tpu_custom_call.1} parent=1 // pred_fallthru
      _
    // Predicated region
    $region22: #{tpu_custom_call.1} parent=1 // pred_check
      _
    $region23: #{tpu_custom_call.1} parent=1 // pred_check_branch
      %118 = sbr.rel (0) target = $region25
    $region24: #{tpu_custom_call.1} parent=1 // pred_region
      %120 = dma.done [#allocation4], 16
    $region25: #{tpu_custom_call.1} parent=1 // pred_fallthru
      _
    %121 = vsyncpa [#allocation3], 1
    %122 = vsyncpa [#allocation6], 1
    %123 = vsyncpa [#allocation4], 1

</llo_original>
